<compile_context>
chip_gen: v7x
topology: tpu7x:2x2x1
jax: 0.10.0
libtpu: 0.0.40
codegen_flags: <defaults>
</compile_context>

<pallas_src>
import jax
import jax.numpy as jnp
from jax.experimental import pallas as pl
from jax.experimental.pallas import tpu as pltpu


def _round_up(x, m):
    return ((x + m - 1) // m) * m


def _default_vmem_cap():
    """Scoped-VMEM cap: ~48 MiB on 64-MiB parts (v7x), ~56 MiB on 128-MiB
    parts (v5e/v6e); conservative fallback if the query is unavailable."""
    try:
        phys = int(pltpu.get_tpu_info().vmem_capacity_bytes)
    except Exception:
        phys = 64 << 20
    return (48 << 20) if phys <= (64 << 20) else (56 << 20)


def _make_kernel(R, D, n_rows, tile_n):
    """R / D / n_rows / tile_n are static Python ints."""
    needs_mask = (n_rows % tile_n) != 0
    small_r = R <= 16

    def kernel(user_ref, rel_t_ref, agg_ref, out_ref):
        # user_ref : (tile_n, D)     rel_t_ref: (R, D)
        # agg_ref  : (tile_n, R*D)   out_ref  : (tile_n, D)
        user = user_ref[...]

        if needs_mask:
            # Zero the rows of a partial last tile: their scores become 0, the
            # softmax stays finite, and Pallas drops those output rows on
            # writeback.  Safe only because every op below is strictly
            # per-row (no cross-row reduction touches the padded rows).
            row = (pl.program_id(0) * tile_n
                   + jax.lax.broadcasted_iota(jnp.int32, (tile_n, 1), 0))
            user = jnp.where(row < n_rows, user, jnp.zeros_like(user))

        if small_r:
            # Exact-f32 scores on the VPU/XLU: R lane-reduces over (tile_n, D).
            # The matmul is tiny (hidden under the to_agg DMA) and this avoids
            # any dependence on the MXU's f32 contraction precision, matching
            # the fp32 PyTorch numerics.
            user_f = user.astype(jnp.float32)
            rel_t = rel_t_ref[...].astype(jnp.float32)
            scores = []
            for r in range(R):
                s = jnp.sum(user_f * rel_t[r:r + 1, :], axis=-1, keepdims=True)
                scores.append(jnp.where(s > 0, s, 0.1 * s))   # LeakyReLU(0.1)

            m = scores[0]
            for s in scores[1:]:
                m = jnp.maximum(m, s)
            exps = [jnp.exp(s - m) for s in scores]
            den = exps[0]
            for e in exps[1:]:
                den = den + e
            inv = 1.0 / den                                    # exact, (tile_n, 1)

            # Weighted sum over R: statically unrolled dense (tile_n, D) FMAs.
            # to_agg stays in its native dtype; accumulation is f32 via
            # dtype promotion.  Static lane slices into the flattened block.
            ctx = (exps[0] * inv) * agg_ref[:, 0:D]
            for r in range(1, R):
                ctx = ctx + (exps[r] * inv) * agg_ref[:, r * D:(r + 1) * D]
        else:
            # Large-R path: MXU matmul (full-f32 contraction) for the scores,
            # bounded-unroll fori_loop for the weighted sum to keep live
            # ranges / code size in check.
            scores = jax.lax.dot_general(
                user, rel_t_ref[...], (((1,), (1,)), ((), ())),
                preferred_element_type=jnp.float32,
                precision=jax.lax.Precision.HIGHEST)
            scores = jnp.where(scores > 0, scores, 0.1 * scores)
            m = jnp.max(scores, axis=-1, keepdims=True)
            e = jnp.exp(scores - m)
            p = e / jnp.sum(e, axis=-1, keepdims=True)

            def body(r, acc):
                w = jax.lax.dynamic_slice_in_dim(p, r, 1, axis=1)   # (tile_n, 1)
                start = pl.multiple_of(r * D, D)
                return acc + w * agg_ref[:, pl.ds(start, D)]

            ctx = jax.lax.fori_loop(0, R, body,
                                    jnp.zeros((tile_n, D), jnp.float32),
                                    unroll=4)

        out_ref[...] = ctx.astype(out_ref.dtype)

    return kernel


def aggregator_forward(user, rel, to_agg, *, tile_n=None, vmem_limit_bytes=None):
    """user: (N, D), rel: (D, R), to_agg: (N, R, D) -> (N, 1, D) float32."""
    N, D = user.shape
    D2, R = rel.shape
    assert D == D2 and to_agg.shape == (N, R, D)
    RD = R * D

    # Free, contiguous flatten -> dense 2-D DMA + static lane slices in-kernel.
    agg2d = to_agg.reshape(N, RD)
    # (R, D) layout so the kernel reads relation r as a (1, D) row broadcast.
    rel_t = rel.T

    # ---- padded (VMEM-layout) sizes ----------------------------------------
    agg_row_b = _round_up(RD, 128) * to_agg.dtype.itemsize
    user_row_b = _round_up(D, 128) * user.dtype.itemsize
    out_row_b = _round_up(D, 128) * 4                          # f32 output
    rel_b = _round_up(R, 8) * _round_up(D, 128) * rel.dtype.itemsize
    per_row_db = 2 * (agg_row_b + user_row_b + out_row_b)      # double-buffered

    cap = _default_vmem_cap()

    # ---- tile sizing ---------------------------------------------------------
    n_pad8 = _round_up(max(N, 1), 8)
    want = 512 if tile_n is None else max(8, (int(tile_n) // 8) * 8)
    # Clamp by the padded, double-buffered working set (4 MiB scratch headroom).
    max_rows = max(8, ((cap - 2 * rel_b - (4 << 20)) // per_row_db) // 8 * 8)
    t = min(want, n_pad8, max_rows)
    if tile_n is None and pl.cdiv(N, t) < 8:
        # Prefer >= 8 grid steps (>= 4 per TensorCore on v7x) when N allows,
        # but never drop below 128 rows (DMA density on v5e/v6e).
        cand = max(128, _round_up(pl.cdiv(n_pad8, 8), 8))
        if cand < t:
            t = cand
    tile_n = t
    grid_n = pl.cdiv(N, tile_n)

    # ---- explicit VMEM budget from padded tile sizes -------------------------
    if vmem_limit_bytes is None:
        need = tile_n * per_row_db + 2 * rel_b
        vmem_limit_bytes = int(min(cap, max(need + (4 << 20), 32 << 20)))

    # ---- advisory cost estimate (clearly memory-bound custom call) -----------
    bytes_accessed = (user.size * user.dtype.itemsize
                      + rel.size * rel.dtype.itemsize
                      + to_agg.size * to_agg.dtype.itemsize
                      + N * D * 4)
    cost = pl.CostEstimate(flops=4 * N * R * D + 6 * N * R,
                           transcendentals=N * R,
                           bytes_accessed=bytes_accessed)

    kernel = _make_kernel(R, D, N, tile_n)

    out = pl.pallas_call(
        kernel,
        out_shape=jax.ShapeDtypeStruct((N, D), jnp.float32),
        grid_spec=pltpu.PrefetchScalarGridSpec(
            num_scalar_prefetch=0,
            grid=(grid_n,),
            in_specs=[
                pl.BlockSpec((tile_n, D), lambda i: (i, 0)),    # user tile
                pl.BlockSpec((R, D), lambda i: (0, 0)),         # rel^T (resident)
                pl.BlockSpec((tile_n, RD), lambda i: (i, 0)),   # to_agg tile (flat)
            ],
            out_specs=pl.BlockSpec((tile_n, D), lambda i: (i, 0)),
        ),
        compiler_params=pltpu.CompilerParams(
            dimension_semantics=("parallel",),
            vmem_limit_bytes=vmem_limit_bytes,
        ),
        cost_estimate=cost,
    )(user, rel_t, agg2d)

    # Match PyTorch output shape (N, 1, D).
    return out[:, None, :]


def _reference(user, rel, to_agg):
    # Full-f32 precision reference (matches fp32 PyTorch semantics).
    scores = jnp.dot(user, rel, precision=jax.lax.Precision.HIGHEST)
    scores = jnp.where(scores > 0, scores, 0.1 * scores)
    scores = jax.nn.softmax(scores, axis=1)
    ctx = jnp.einsum("nr,nrd->nd", scores, to_agg,
                     precision=jax.lax.Precision.HIGHEST)
    return ctx[:, None, :]


if __name__ == "__main__":
    root = jax.random.PRNGKey(0)

    def run_case(N, D, R, key):
        k1, k2, k3 = jax.random.split(key, 3)
        user = jax.random.normal(k1, (N, D), dtype=jnp.float32)
        rel = jax.random.normal(k2, (D, R), dtype=jnp.float32)
        to_agg = jax.random.normal(k3, (N, R, D), dtype=jnp.float32)
        out = jax.block_until_ready(aggregator_forward(user, rel, to_agg))
        ref = jax.block_until_ready(_reference(user, rel, to_agg))
        assert out.shape == (N, 1, D)
        assert jnp.allclose(out, ref, atol=5e-4, rtol=5e-4), (
            f"mismatch vs reference: max abs err {jnp.max(jnp.abs(out - ref))}")

    keys = jax.random.split(root, 3)
    # Shapes from the module docstring (N=128, D=64, R=5): single full tile.
    run_case(128, 64, 5, keys[0])
    # Non-divisible N exercises the partial-tile masking path.
    run_case(100, 64, 5, keys[1])
    # Larger N exercises the multi-step grid (pipelined DMA) + partial last tile.
    run_case(1000, 64, 5, keys[2])

    print("KERNEL_OK")
</pallas_src>

<mosaic_0001>
module attributes {stable_mosaic.version = 11 : i64} {
  func.func @kernel(%arg0: i32, %arg1: memref<128x64xf32, #tpu.memory_space<vmem>>, %arg2: memref<5x64xf32, #tpu.memory_space<vmem>>, %arg3: memref<128x320xf32, #tpu.memory_space<vmem>>, %arg4: memref<128x64xf32, #tpu.memory_space<vmem>>) attributes {dimension_semantics = [#tpu.dimension_semantics<parallel>], iteration_bounds = array<i64: 1>, scalar_prefetch = 0 : i64, scratch_operands = 0 : i64, tpu.core_type = #tpu.core_type<tc>, window_params = [{transform_indices = @transform_0, window_bounds = array<i64: 128, 64>}, {pipeline_mode = #tpu.pipeline_mode<synchronous>, transform_indices = @transform_1, window_bounds = array<i64: 5, 64>}, {transform_indices = @transform_2, window_bounds = array<i64: 128, 320>}, {transform_indices = @transform_3, window_bounds = array<i64: 128, 64>}]} {
    %c0 = arith.constant 0 : index
    %c0_0 = arith.constant 0 : index
    %0 = vector.load %arg1[%c0, %c0_0] : memref<128x64xf32, #tpu.memory_space<vmem>>, vector<128x64xf32>
    %c0_1 = arith.constant 0 : index
    %c0_2 = arith.constant 0 : index
    %1 = vector.load %arg2[%c0_1, %c0_2] : memref<5x64xf32, #tpu.memory_space<vmem>>, vector<5x64xf32>
    %2 = vector.extract_strided_slice %1 {offsets = [0, 0], sizes = [1, 64], strides = [1, 1]} : vector<5x64xf32> to vector<1x64xf32>
    %3 = vector.broadcast %2 : vector<1x64xf32> to vector<128x64xf32>
    %4 = arith.mulf %0, %3 : vector<128x64xf32>
    %cst = arith.constant dense<0.000000e+00> : vector<128xf32>
    %5 = vector.multi_reduction <add>, %4, %cst [1] : vector<128x64xf32> to vector<128xf32>
    %6 = vector.shape_cast %5 : vector<128xf32> to vector<128x1xf32>
    %cst_3 = arith.constant 0.000000e+00 : f32
    %7 = vector.broadcast %cst_3 : f32 to vector<128x1xf32>
    %8 = arith.cmpf ogt, %6, %7 : vector<128x1xf32>
    %cst_4 = arith.constant 1.000000e-01 : f32
    %9 = vector.broadcast %cst_4 : f32 to vector<128x1xf32>
    %10 = arith.mulf %9, %6 : vector<128x1xf32>
    %11 = arith.select %8, %6, %10 : vector<128x1xi1>, vector<128x1xf32>
    %12 = vector.extract_strided_slice %1 {offsets = [1, 0], sizes = [1, 64], strides = [1, 1]} : vector<5x64xf32> to vector<1x64xf32>
    %13 = vector.broadcast %12 : vector<1x64xf32> to vector<128x64xf32>
    %14 = arith.mulf %0, %13 : vector<128x64xf32>
    %cst_5 = arith.constant dense<0.000000e+00> : vector<128xf32>
    %15 = vector.multi_reduction <add>, %14, %cst_5 [1] : vector<128x64xf32> to vector<128xf32>
    %16 = vector.shape_cast %15 : vector<128xf32> to vector<128x1xf32>
    %cst_6 = arith.constant 0.000000e+00 : f32
    %17 = vector.broadcast %cst_6 : f32 to vector<128x1xf32>
    %18 = arith.cmpf ogt, %16, %17 : vector<128x1xf32>
    %cst_7 = arith.constant 1.000000e-01 : f32
    %19 = vector.broadcast %cst_7 : f32 to vector<128x1xf32>
    %20 = arith.mulf %19, %16 : vector<128x1xf32>
    %21 = arith.select %18, %16, %20 : vector<128x1xi1>, vector<128x1xf32>
    %22 = vector.extract_strided_slice %1 {offsets = [2, 0], sizes = [1, 64], strides = [1, 1]} : vector<5x64xf32> to vector<1x64xf32>
    %23 = vector.broadcast %22 : vector<1x64xf32> to vector<128x64xf32>
    %24 = arith.mulf %0, %23 : vector<128x64xf32>
    %cst_8 = arith.constant dense<0.000000e+00> : vector<128xf32>
    %25 = vector.multi_reduction <add>, %24, %cst_8 [1] : vector<128x64xf32> to vector<128xf32>
    %26 = vector.shape_cast %25 : vector<128xf32> to vector<128x1xf32>
    %cst_9 = arith.constant 0.000000e+00 : f32
    %27 = vector.broadcast %cst_9 : f32 to vector<128x1xf32>
    %28 = arith.cmpf ogt, %26, %27 : vector<128x1xf32>
    %cst_10 = arith.constant 1.000000e-01 : f32
    %29 = vector.broadcast %cst_10 : f32 to vector<128x1xf32>
    %30 = arith.mulf %29, %26 : vector<128x1xf32>
    %31 = arith.select %28, %26, %30 : vector<128x1xi1>, vector<128x1xf32>
    %32 = vector.extract_strided_slice %1 {offsets = [3, 0], sizes = [1, 64], strides = [1, 1]} : vector<5x64xf32> to vector<1x64xf32>
    %33 = vector.broadcast %32 : vector<1x64xf32> to vector<128x64xf32>
    %34 = arith.mulf %0, %33 : vector<128x64xf32>
    %cst_11 = arith.constant dense<0.000000e+00> : vector<128xf32>
    %35 = vector.multi_reduction <add>, %34, %cst_11 [1] : vector<128x64xf32> to vector<128xf32>
    %36 = vector.shape_cast %35 : vector<128xf32> to vector<128x1xf32>
    %cst_12 = arith.constant 0.000000e+00 : f32
    %37 = vector.broadcast %cst_12 : f32 to vector<128x1xf32>
    %38 = arith.cmpf ogt, %36, %37 : vector<128x1xf32>
    %cst_13 = arith.constant 1.000000e-01 : f32
    %39 = vector.broadcast %cst_13 : f32 to vector<128x1xf32>
    %40 = arith.mulf %39, %36 : vector<128x1xf32>
    %41 = arith.select %38, %36, %40 : vector<128x1xi1>, vector<128x1xf32>
    %42 = vector.extract_strided_slice %1 {offsets = [4, 0], sizes = [1, 64], strides = [1, 1]} : vector<5x64xf32> to vector<1x64xf32>
    %43 = vector.broadcast %42 : vector<1x64xf32> to vector<128x64xf32>
    %44 = arith.mulf %0, %43 : vector<128x64xf32>
    %cst_14 = arith.constant dense<0.000000e+00> : vector<128xf32>
    %45 = vector.multi_reduction <add>, %44, %cst_14 [1] : vector<128x64xf32> to vector<128xf32>
    %46 = vector.shape_cast %45 : vector<128xf32> to vector<128x1xf32>
    %cst_15 = arith.constant 0.000000e+00 : f32
    %47 = vector.broadcast %cst_15 : f32 to vector<128x1xf32>
    %48 = arith.cmpf ogt, %46, %47 : vector<128x1xf32>
    %cst_16 = arith.constant 1.000000e-01 : f32
    %49 = vector.broadcast %cst_16 : f32 to vector<128x1xf32>
    %50 = arith.mulf %49, %46 : vector<128x1xf32>
    %51 = arith.select %48, %46, %50 : vector<128x1xi1>, vector<128x1xf32>
    %52 = arith.maximumf %11, %21 : vector<128x1xf32>
    %53 = arith.maximumf %52, %31 : vector<128x1xf32>
    %54 = arith.maximumf %53, %41 : vector<128x1xf32>
    %55 = arith.maximumf %54, %51 : vector<128x1xf32>
    %56 = arith.subf %11, %55 : vector<128x1xf32>
    %57 = math.exp %56 : vector<128x1xf32>
    %58 = arith.subf %21, %55 : vector<128x1xf32>
    %59 = math.exp %58 : vector<128x1xf32>
    %60 = arith.subf %31, %55 : vector<128x1xf32>
    %61 = math.exp %60 : vector<128x1xf32>
    %62 = arith.subf %41, %55 : vector<128x1xf32>
    %63 = math.exp %62 : vector<128x1xf32>
    %64 = arith.subf %51, %55 : vector<128x1xf32>
    %65 = math.exp %64 : vector<128x1xf32>
    %66 = arith.addf %57, %59 : vector<128x1xf32>
    %67 = arith.addf %66, %61 : vector<128x1xf32>
    %68 = arith.addf %67, %63 : vector<128x1xf32>
    %69 = arith.addf %68, %65 : vector<128x1xf32>
    %cst_17 = arith.constant 1.000000e+00 : f32
    %70 = vector.broadcast %cst_17 : f32 to vector<128x1xf32>
    %71 = arith.divf %70, %69 : vector<128x1xf32>
    %72 = arith.mulf %57, %71 : vector<128x1xf32>
    %c0_18 = arith.constant 0 : index
    %c0_19 = arith.constant 0 : index
    %73 = vector.load %arg3[%c0_18, %c0_19] : memref<128x320xf32, #tpu.memory_space<vmem>>, vector<128x64xf32>
    %74 = vector.broadcast %72 : vector<128x1xf32> to vector<128x64xf32>
    %75 = arith.mulf %74, %73 : vector<128x64xf32>
    %76 = arith.mulf %59, %71 : vector<128x1xf32>
    %c0_20 = arith.constant 0 : index
    %c64 = arith.constant 64 : index
    %77 = vector.load %arg3[%c0_20, %c64] : memref<128x320xf32, #tpu.memory_space<vmem>>, vector<128x64xf32>
    %78 = vector.broadcast %76 : vector<128x1xf32> to vector<128x64xf32>
    %79 = arith.mulf %78, %77 : vector<128x64xf32>
    %80 = arith.addf %75, %79 : vector<128x64xf32>
    %81 = arith.mulf %61, %71 : vector<128x1xf32>
    %c0_21 = arith.constant 0 : index
    %c128 = arith.constant 128 : index
    %82 = vector.load %arg3[%c0_21, %c128] : memref<128x320xf32, #tpu.memory_space<vmem>>, vector<128x64xf32>
    %83 = vector.broadcast %81 : vector<128x1xf32> to vector<128x64xf32>
    %84 = arith.mulf %83, %82 : vector<128x64xf32>
    %85 = arith.addf %80, %84 : vector<128x64xf32>
    %86 = arith.mulf %63, %71 : vector<128x1xf32>
    %c0_22 = arith.constant 0 : index
    %c192 = arith.constant 192 : index
    %87 = vector.load %arg3[%c0_22, %c192] : memref<128x320xf32, #tpu.memory_space<vmem>>, vector<128x64xf32>
    %88 = vector.broadcast %86 : vector<128x1xf32> to vector<128x64xf32>
    %89 = arith.mulf %88, %87 : vector<128x64xf32>
    %90 = arith.addf %85, %89 : vector<128x64xf32>
    %91 = arith.mulf %65, %71 : vector<128x1xf32>
    %c0_23 = arith.constant 0 : index
    %c256 = arith.constant 256 : index
    %92 = vector.load %arg3[%c0_23, %c256] : memref<128x320xf32, #tpu.memory_space<vmem>>, vector<128x64xf32>
    %93 = vector.broadcast %91 : vector<128x1xf32> to vector<128x64xf32>
    %94 = arith.mulf %93, %92 : vector<128x64xf32>
    %95 = arith.addf %90, %94 : vector<128x64xf32>
    %c0_24 = arith.constant 0 : index
    %c0_25 = arith.constant 0 : index
    %96 = vector.load %arg4[%c0_24, %c0_25] : memref<128x64xf32, #tpu.memory_space<vmem>>, vector<128x64xf32>
    tpu.vector_store %arg4[%c0_24, %c0_25], %95 {strides = array<i32>} : memref<128x64xf32, #tpu.memory_space<vmem>>, vector<128x64xf32>,
    return
  }
  func.func @transform_0(%arg0: i32) -> (i32, i32) {
    %c0_i32 = arith.constant 0 : i32
    %c0_i32_0 = arith.constant 0 : i32
    return %arg0, %c0_i32 : i32, i32
  }
  func.func @transform_1(%arg0: i32) -> (i32, i32) {
    %c0_i32 = arith.constant 0 : i32
    %c0_i32_0 = arith.constant 0 : i32
    %c0_i32_1 = arith.constant 0 : i32
    return %c0_i32, %c0_i32_0 : i32, i32
  }
  func.func @transform_2(%arg0: i32) -> (i32, i32) {
    %c0_i32 = arith.constant 0 : i32
    %c0_i32_0 = arith.constant 0 : i32
    return %arg0, %c0_i32 : i32, i32
  }
  func.func @transform_3(%arg0: i32) -> (i32, i32) {
    %c0_i32 = arith.constant 0 : i32
    %c0_i32_0 = arith.constant 0 : i32
    return %arg0, %c0_i32 : i32, i32
  }
}

</mosaic_0001>

<llo_original>
// kernel: tpu_custom_call.1
$region0: #{tpu_custom_call.1}
  #allocation0 [shape = 'u32[]', space=smem, size = 0x4, offset = 0x4, fixed_abs, tag = 'smem constant byte address 0x4 - core index']
  #allocation1 [shape = 'u32[144,128]{1,0:T(1,128)}', space=vmem, size = 0x12000, scoped, tag = 'internal scratch']
  %s0 = inlined_call_operand.vmem [shape: f32[128,64], index: 0, kind: input, shape index: {}]
  %s1 = inlined_call_operand.vmem [shape: f32[5,64], index: 1, kind: input, shape index: {}]
  %s2 = inlined_call_operand.vmem [shape: f32[128,320], index: 2, kind: input, shape index: {}]
  %s3 = inlined_call_operand.vmem [shape: f32[128,64], index: 3, kind: output, shape index: {}]
  %s4 = sld [smem:[#allocation0]]
  $region22: #{tpu_custom_call.1} parent=0
    _
  %s6 = ssub.s32 1, %s4
  %s7 = scalar_select 0, %s6, %s4
  // Predicated region
  $region2: #{tpu_custom_call.1} parent=0 // pred_check
    _
  $region3: #{tpu_custom_call.1} parent=0 // pred_check_branch
    %9 = sbr.rel (0) target = $region5
  $region4: #{tpu_custom_call.1} parent=0 // pred_region
    _
  $region5: #{tpu_custom_call.1} parent=0 // pred_fallthru
    _
  // Predicated region
  $region6: #{tpu_custom_call.1} parent=0 // pred_check
    _
  $region7: #{tpu_custom_call.1} parent=0 // pred_check_branch
    %11 = sbr.rel (0) target = $region9
  $region8: #{tpu_custom_call.1} parent=0 // pred_region
    _
  $region9: #{tpu_custom_call.1} parent=0 // pred_fallthru
    _
  // Predicated region
  $region10: #{tpu_custom_call.1} parent=0 // pred_check
    _
  $region11: #{tpu_custom_call.1} parent=0 // pred_check_branch
    %13 = sbr.rel (0) target = $region13
  $region12: #{tpu_custom_call.1} parent=0 // pred_region
    _
  $region13: #{tpu_custom_call.1} parent=0 // pred_fallthru
    _
  %v14 = vld [vmem:[%s0] sm:$0xff]
  %v15 = vld [vmem:[%s0 + $0x8] sm:$0xff]
  %v16 = vld [vmem:[%s0 + $0x10] sm:$0xff]
  %v17 = vld [vmem:[%s0 + $0x18] sm:$0xff]
  %v18 = vld [vmem:[%s0 + $0x20] sm:$0xff]
  %v19 = vld [vmem:[%s0 + $0x28] sm:$0xff]
  %v20 = vld [vmem:[%s0 + $0x30] sm:$0xff]
  %v21 = vld [vmem:[%s0 + $0x38] sm:$0xff]
  %v22 = vld [vmem:[%s0 + $0x40] sm:$0xff]
  %v23 = vld [vmem:[%s0 + $0x48] sm:$0xff]
  %v24 = vld [vmem:[%s0 + $0x50] sm:$0xff]
  %v25 = vld [vmem:[%s0 + $0x58] sm:$0xff]
  %v26 = vld [vmem:[%s0 + $0x60] sm:$0xff]
  %v27 = vld [vmem:[%s0 + $0x68] sm:$0xff]
  %v28 = vld [vmem:[%s0 + $0x70] sm:$0xff]
  %v29 = vld [vmem:[%s0 + $0x78] sm:$0xff]
  %v30 = vld [vmem:[%s1] sm:$0x1f]
  %v31 = vlaneseq
  %v32 = vshrl.u32 %v31, 7
  %v33 = vsub.s32 0, %v32
  %v34 = vrot.slane %v30, %v33
  %v35 = vmul.f32 %v14, %v34
  %v36 = vmul.f32 %v15, %v34
  %v37 = vmul.f32 %v16, %v34
  %v38 = vmul.f32 %v17, %v34
  %v39 = vmul.f32 %v18, %v34
  %v40 = vmul.f32 %v19, %v34
  %v41 = vmul.f32 %v20, %v34
  %v42 = vmul.f32 %v21, %v34
  %v43 = vmul.f32 %v22, %v34
  %v44 = vmul.f32 %v23, %v34
  %v45 = vmul.f32 %v24, %v34
  %v46 = vmul.f32 %v25, %v34
  %v47 = vmul.f32 %v26, %v34
  %v48 = vmul.f32 %v27, %v34
  %v49 = vmul.f32 %v28, %v34
  %v50 = vmul.f32 %v29, %v34
  %vm51 = vcmask 523264
  %v52 = vsel %vm51, %v35, 0.0
  %53 = vadd.xlane.f32.xlu0 %v52
  %v54 = vpop.xlane.xlu0 %53
  %v55 = vsel %vm51, %v36, 0.0
  %56 = vadd.xlane.f32.xlu0 %v55
  %v57 = vpop.xlane.xlu0 %56
  %v58 = vsel %vm51, %v37, 0.0
  %59 = vadd.xlane.f32.xlu0 %v58
  %v60 = vpop.xlane.xlu0 %59
  %v61 = vsel %vm51, %v38, 0.0
  %62 = vadd.xlane.f32.xlu0 %v61
  %v63 = vpop.xlane.xlu0 %62
  %v64 = vsel %vm51, %v39, 0.0
  %65 = vadd.xlane.f32.xlu0 %v64
  %v66 = vpop.xlane.xlu0 %65
  %v67 = vsel %vm51, %v40, 0.0
  %68 = vadd.xlane.f32.xlu0 %v67
  %v69 = vpop.xlane.xlu0 %68
  %v70 = vsel %vm51, %v41, 0.0
  %71 = vadd.xlane.f32.xlu0 %v70
  %v72 = vpop.xlane.xlu0 %71
  %v73 = vsel %vm51, %v42, 0.0
  %74 = vadd.xlane.f32.xlu0 %v73
  %v75 = vpop.xlane.xlu0 %74
  %v76 = vsel %vm51, %v43, 0.0
  %77 = vadd.xlane.f32.xlu0 %v76
  %v78 = vpop.xlane.xlu0 %77
  %v79 = vsel %vm51, %v44, 0.0
  %80 = vadd.xlane.f32.xlu0 %v79
  %v81 = vpop.xlane.xlu0 %80
  %v82 = vsel %vm51, %v45, 0.0
  %83 = vadd.xlane.f32.xlu0 %v82
  %v84 = vpop.xlane.xlu0 %83
  %v85 = vsel %vm51, %v46, 0.0
  %86 = vadd.xlane.f32.xlu0 %v85
  %v87 = vpop.xlane.xlu0 %86
  %v88 = vsel %vm51, %v47, 0.0
  %89 = vadd.xlane.f32.xlu0 %v88
  %v90 = vpop.xlane.xlu0 %89
  %v91 = vsel %vm51, %v48, 0.0
  %92 = vadd.xlane.f32.xlu0 %v91
  %v93 = vpop.xlane.xlu0 %92
  %v94 = vsel %vm51, %v49, 0.0
  %95 = vadd.xlane.f32.xlu0 %v94
  %v96 = vpop.xlane.xlu0 %95
  %v97 = vsel %vm51, %v50, 0.0
  %98 = vadd.xlane.f32.xlu0 %v97
  %v99 = vpop.xlane.xlu0 %98
  %vm100 = vcmp.gt.f32.partialorder %v54, 0.0
  %vm101 = vcmp.gt.f32.partialorder %v57, 0.0
  %vm102 = vcmp.gt.f32.partialorder %v60, 0.0
  %vm103 = vcmp.gt.f32.partialorder %v63, 0.0
  %vm104 = vcmp.gt.f32.partialorder %v66, 0.0
  %vm105 = vcmp.gt.f32.partialorder %v69, 0.0
  %vm106 = vcmp.gt.f32.partialorder %v72, 0.0
  %vm107 = vcmp.gt.f32.partialorder %v75, 0.0
  %vm108 = vcmp.gt.f32.partialorder %v78, 0.0
  %vm109 = vcmp.gt.f32.partialorder %v81, 0.0
  %vm110 = vcmp.gt.f32.partialorder %v84, 0.0
  %vm111 = vcmp.gt.f32.partialorder %v87, 0.0
  %vm112 = vcmp.gt.f32.partialorder %v90, 0.0
  %vm113 = vcmp.gt.f32.partialorder %v93, 0.0
  %vm114 = vcmp.gt.f32.partialorder %v96, 0.0
  %vm115 = vcmp.gt.f32.partialorder %v99, 0.0
  %v116 = vmul.f32 %v54, 0.1
  %v117 = vmul.f32 %v57, 0.1
  %v118 = vmul.f32 %v60, 0.1
  %v119 = vmul.f32 %v63, 0.1
  %v120 = vmul.f32 %v66, 0.1
  %v121 = vmul.f32 %v69, 0.1
  %v122 = vmul.f32 %v72, 0.1
  %v123 = vmul.f32 %v75, 0.1
  %v124 = vmul.f32 %v78, 0.1
  %v125 = vmul.f32 %v81, 0.1
  %v126 = vmul.f32 %v84, 0.1
  %v127 = vmul.f32 %v87, 0.1
  %v128 = vmul.f32 %v90, 0.1
  %v129 = vmul.f32 %v93, 0.1
  %v130 = vmul.f32 %v96, 0.1
  %v131 = vmul.f32 %v99, 0.1
  %v132 = vsel %vm100, %v54, %v116
  %v133 = vsel %vm101, %v57, %v117
  %v134 = vsel %vm102, %v60, %v118
  %v135 = vsel %vm103, %v63, %v119
  %v136 = vsel %vm104, %v66, %v120
  %v137 = vsel %vm105, %v69, %v121
  %v138 = vsel %vm106, %v72, %v122
  %v139 = vsel %vm107, %v75, %v123
  %v140 = vsel %vm108, %v78, %v124
  %v141 = vsel %vm109, %v81, %v125
  %v142 = vsel %vm110, %v84, %v126
  %v143 = vsel %vm111, %v87, %v127
  %v144 = vsel %vm112, %v90, %v128
  %v145 = vsel %vm113, %v93, %v129
  %v146 = vsel %vm114, %v96, %v130
  %v147 = vsel %vm115, %v99, %v131
  %v148 = vlaneseq
  %v149 = vshrl.u32 %v148, 7
  %v150 = vsub.s32 1, %v149
  %v151 = vrot.slane %v30, %v150
  %v152 = vmul.f32 %v14, %v151
  %v153 = vmul.f32 %v15, %v151
  %v154 = vmul.f32 %v16, %v151
  %v155 = vmul.f32 %v17, %v151
  %v156 = vmul.f32 %v18, %v151
  %v157 = vmul.f32 %v19, %v151
  %v158 = vmul.f32 %v20, %v151
  %v159 = vmul.f32 %v21, %v151
  %v160 = vmul.f32 %v22, %v151
  %v161 = vmul.f32 %v23, %v151
  %v162 = vmul.f32 %v24, %v151
  %v163 = vmul.f32 %v25, %v151
  %v164 = vmul.f32 %v26, %v151
  %v165 = vmul.f32 %v27, %v151
  %v166 = vmul.f32 %v28, %v151
  %v167 = vmul.f32 %v29, %v151
  %v168 = vsel %vm51, %v152, 0.0
  %169 = vadd.xlane.f32.xlu0 %v168
  %v170 = vpop.xlane.xlu0 %169
  %v171 = vsel %vm51, %v153, 0.0
  %172 = vadd.xlane.f32.xlu0 %v171
  %v173 = vpop.xlane.xlu0 %172
  %v174 = vsel %vm51, %v154, 0.0
  %175 = vadd.xlane.f32.xlu0 %v174
  %v176 = vpop.xlane.xlu0 %175
  %v177 = vsel %vm51, %v155, 0.0
  %178 = vadd.xlane.f32.xlu0 %v177
  %v179 = vpop.xlane.xlu0 %178
  %v180 = vsel %vm51, %v156, 0.0
  %181 = vadd.xlane.f32.xlu0 %v180
  %v182 = vpop.xlane.xlu0 %181
  %v183 = vsel %vm51, %v157, 0.0
  %184 = vadd.xlane.f32.xlu0 %v183
  %v185 = vpop.xlane.xlu0 %184
  %v186 = vsel %vm51, %v158, 0.0
  %187 = vadd.xlane.f32.xlu0 %v186
  %v188 = vpop.xlane.xlu0 %187
  %v189 = vsel %vm51, %v159, 0.0
  %190 = vadd.xlane.f32.xlu0 %v189
  %v191 = vpop.xlane.xlu0 %190
  %v192 = vsel %vm51, %v160, 0.0
  %193 = vadd.xlane.f32.xlu0 %v192
  %v194 = vpop.xlane.xlu0 %193
  %v195 = vsel %vm51, %v161, 0.0
  %196 = vadd.xlane.f32.xlu0 %v195
  %v197 = vpop.xlane.xlu0 %196
  %v198 = vsel %vm51, %v162, 0.0
  %199 = vadd.xlane.f32.xlu0 %v198
  %v200 = vpop.xlane.xlu0 %199
  %v201 = vsel %vm51, %v163, 0.0
  %202 = vadd.xlane.f32.xlu0 %v201
  %v203 = vpop.xlane.xlu0 %202
  %v204 = vsel %vm51, %v164, 0.0
  %205 = vadd.xlane.f32.xlu0 %v204
  %v206 = vpop.xlane.xlu0 %205
  %v207 = vsel %vm51, %v165, 0.0
  %208 = vadd.xlane.f32.xlu0 %v207
  %v209 = vpop.xlane.xlu0 %208
  %v210 = vsel %vm51, %v166, 0.0
  %211 = vadd.xlane.f32.xlu0 %v210
  %v212 = vpop.xlane.xlu0 %211
  %v213 = vsel %vm51, %v167, 0.0
  %214 = vadd.xlane.f32.xlu0 %v213
  %v215 = vpop.xlane.xlu0 %214
  %vm216 = vcmp.gt.f32.partialorder %v170, 0.0
  %vm217 = vcmp.gt.f32.partialorder %v173, 0.0
  %vm218 = vcmp.gt.f32.partialorder %v176, 0.0
  %vm219 = vcmp.gt.f32.partialorder %v179, 0.0
  %vm220 = vcmp.gt.f32.partialorder %v182, 0.0
  %vm221 = vcmp.gt.f32.partialorder %v185, 0.0
  %vm222 = vcmp.gt.f32.partialorder %v188, 0.0
  %vm223 = vcmp.gt.f32.partialorder %v191, 0.0
  %vm224 = vcmp.gt.f32.partialorder %v194, 0.0
  %vm225 = vcmp.gt.f32.partialorder %v197, 0.0
  %vm226 = vcmp.gt.f32.partialorder %v200, 0.0
  %vm227 = vcmp.gt.f32.partialorder %v203, 0.0
  %vm228 = vcmp.gt.f32.partialorder %v206, 0.0
  %vm229 = vcmp.gt.f32.partialorder %v209, 0.0
  %vm230 = vcmp.gt.f32.partialorder %v212, 0.0
  %vm231 = vcmp.gt.f32.partialorder %v215, 0.0
  %v232 = vmul.f32 %v170, 0.1
  %v233 = vmul.f32 %v173, 0.1
  %v234 = vmul.f32 %v176, 0.1
  %v235 = vmul.f32 %v179, 0.1
  %v236 = vmul.f32 %v182, 0.1
  %v237 = vmul.f32 %v185, 0.1
  %v238 = vmul.f32 %v188, 0.1
  %v239 = vmul.f32 %v191, 0.1
  %v240 = vmul.f32 %v194, 0.1
  %v241 = vmul.f32 %v197, 0.1
  %v242 = vmul.f32 %v200, 0.1
  %v243 = vmul.f32 %v203, 0.1
  %v244 = vmul.f32 %v206, 0.1
  %v245 = vmul.f32 %v209, 0.1
  %v246 = vmul.f32 %v212, 0.1
  %v247 = vmul.f32 %v215, 0.1
  %v248 = vsel %vm216, %v170, %v232
  %v249 = vsel %vm217, %v173, %v233
  %v250 = vsel %vm218, %v176, %v234
  %v251 = vsel %vm219, %v179, %v235
  %v252 = vsel %vm220, %v182, %v236
  %v253 = vsel %vm221, %v185, %v237
  %v254 = vsel %vm222, %v188, %v238
  %v255 = vsel %vm223, %v191, %v239
  %v256 = vsel %vm224, %v194, %v240
  %v257 = vsel %vm225, %v197, %v241
  %v258 = vsel %vm226, %v200, %v242
  %v259 = vsel %vm227, %v203, %v243
  %v260 = vsel %vm228, %v206, %v244
  %v261 = vsel %vm229, %v209, %v245
  %v262 = vsel %vm230, %v212, %v246
  %v263 = vsel %vm231, %v215, %v247
  %v264 = vlaneseq
  %v265 = vshrl.u32 %v264, 7
  %v266 = vsub.s32 2, %v265
  %v267 = vrot.slane %v30, %v266
  %v268 = vmul.f32 %v14, %v267
  %v269 = vmul.f32 %v15, %v267
  %v270 = vmul.f32 %v16, %v267
  %v271 = vmul.f32 %v17, %v267
  %v272 = vmul.f32 %v18, %v267
  %v273 = vmul.f32 %v19, %v267
  %v274 = vmul.f32 %v20, %v267
  %v275 = vmul.f32 %v21, %v267
  %v276 = vmul.f32 %v22, %v267
  %v277 = vmul.f32 %v23, %v267
  %v278 = vmul.f32 %v24, %v267
  %v279 = vmul.f32 %v25, %v267
  %v280 = vmul.f32 %v26, %v267
  %v281 = vmul.f32 %v27, %v267
  %v282 = vmul.f32 %v28, %v267
  %v283 = vmul.f32 %v29, %v267
  %v284 = vsel %vm51, %v268, 0.0
  %285 = vadd.xlane.f32.xlu0 %v284
  %v286 = vpop.xlane.xlu0 %285
  %v287 = vsel %vm51, %v269, 0.0
  %288 = vadd.xlane.f32.xlu0 %v287
  %v289 = vpop.xlane.xlu0 %288
  %v290 = vsel %vm51, %v270, 0.0
  %291 = vadd.xlane.f32.xlu0 %v290
  %v292 = vpop.xlane.xlu0 %291
  %v293 = vsel %vm51, %v271, 0.0
  %294 = vadd.xlane.f32.xlu0 %v293
  %v295 = vpop.xlane.xlu0 %294
  %v296 = vsel %vm51, %v272, 0.0
  %297 = vadd.xlane.f32.xlu0 %v296
  %v298 = vpop.xlane.xlu0 %297
  %v299 = vsel %vm51, %v273, 0.0
  %300 = vadd.xlane.f32.xlu0 %v299
  %v301 = vpop.xlane.xlu0 %300
  %v302 = vsel %vm51, %v274, 0.0
  %303 = vadd.xlane.f32.xlu0 %v302
  %v304 = vpop.xlane.xlu0 %303
  %v305 = vsel %vm51, %v275, 0.0
  %306 = vadd.xlane.f32.xlu0 %v305
  %v307 = vpop.xlane.xlu0 %306
  %v308 = vsel %vm51, %v276, 0.0
  %309 = vadd.xlane.f32.xlu0 %v308
  %v310 = vpop.xlane.xlu0 %309
  %v311 = vsel %vm51, %v277, 0.0
  %312 = vadd.xlane.f32.xlu0 %v311
  %v313 = vpop.xlane.xlu0 %312
  %v314 = vsel %vm51, %v278, 0.0
  %315 = vadd.xlane.f32.xlu0 %v314
  %v316 = vpop.xlane.xlu0 %315
  %v317 = vsel %vm51, %v279, 0.0
  %318 = vadd.xlane.f32.xlu0 %v317
  %v319 = vpop.xlane.xlu0 %318
  %v320 = vsel %vm51, %v280, 0.0
  %321 = vadd.xlane.f32.xlu0 %v320
  %v322 = vpop.xlane.xlu0 %321
  %v323 = vsel %vm51, %v281, 0.0
  %324 = vadd.xlane.f32.xlu0 %v323
  %v325 = vpop.xlane.xlu0 %324
  %v326 = vsel %vm51, %v282, 0.0
  %327 = vadd.xlane.f32.xlu0 %v326
  %v328 = vpop.xlane.xlu0 %327
  %v329 = vsel %vm51, %v283, 0.0
  %330 = vadd.xlane.f32.xlu0 %v329
  %v331 = vpop.xlane.xlu0 %330
  %vm332 = vcmp.gt.f32.partialorder %v286, 0.0
  %vm333 = vcmp.gt.f32.partialorder %v289, 0.0
  %vm334 = vcmp.gt.f32.partialorder %v292, 0.0
  %vm335 = vcmp.gt.f32.partialorder %v295, 0.0
  %vm336 = vcmp.gt.f32.partialorder %v298, 0.0
  %vm337 = vcmp.gt.f32.partialorder %v301, 0.0
  %vm338 = vcmp.gt.f32.partialorder %v304, 0.0
  %vm339 = vcmp.gt.f32.partialorder %v307, 0.0
  %vm340 = vcmp.gt.f32.partialorder %v310, 0.0
  %vm341 = vcmp.gt.f32.partialorder %v313, 0.0
  %vm342 = vcmp.gt.f32.partialorder %v316, 0.0
  %vm343 = vcmp.gt.f32.partialorder %v319, 0.0
  %vm344 = vcmp.gt.f32.partialorder %v322, 0.0
  %vm345 = vcmp.gt.f32.partialorder %v325, 0.0
  %vm346 = vcmp.gt.f32.partialorder %v328, 0.0
  %vm347 = vcmp.gt.f32.partialorder %v331, 0.0
  %v348 = vmul.f32 %v286, 0.1
  %v349 = vmul.f32 %v289, 0.1
  %v350 = vmul.f32 %v292, 0.1
  %v351 = vmul.f32 %v295, 0.1
  %v352 = vmul.f32 %v298, 0.1
  %v353 = vmul.f32 %v301, 0.1
  %v354 = vmul.f32 %v304, 0.1
  %v355 = vmul.f32 %v307, 0.1
  %v356 = vmul.f32 %v310, 0.1
  %v357 = vmul.f32 %v313, 0.1
  %v358 = vmul.f32 %v316, 0.1
  %v359 = vmul.f32 %v319, 0.1
  %v360 = vmul.f32 %v322, 0.1
  %v361 = vmul.f32 %v325, 0.1
  %v362 = vmul.f32 %v328, 0.1
  %v363 = vmul.f32 %v331, 0.1
  %v364 = vsel %vm332, %v286, %v348
  %v365 = vsel %vm333, %v289, %v349
  %v366 = vsel %vm334, %v292, %v350
  %v367 = vsel %vm335, %v295, %v351
  %v368 = vsel %vm336, %v298, %v352
  %v369 = vsel %vm337, %v301, %v353
  %v370 = vsel %vm338, %v304, %v354
  %v371 = vsel %vm339, %v307, %v355
  %v372 = vsel %vm340, %v310, %v356
  %v373 = vsel %vm341, %v313, %v357
  %v374 = vsel %vm342, %v316, %v358
  %v375 = vsel %vm343, %v319, %v359
  %v376 = vsel %vm344, %v322, %v360
  %v377 = vsel %vm345, %v325, %v361
  %v378 = vsel %vm346, %v328, %v362
  %v379 = vsel %vm347, %v331, %v363
  %v380 = vlaneseq
  %v381 = vshrl.u32 %v380, 7
  %v382 = vsub.s32 3, %v381
  %v383 = vrot.slane %v30, %v382
  %v384 = vmul.f32 %v14, %v383
  %v385 = vmul.f32 %v15, %v383
  %v386 = vmul.f32 %v16, %v383
  %v387 = vmul.f32 %v17, %v383
  %v388 = vmul.f32 %v18, %v383
  %v389 = vmul.f32 %v19, %v383
  %v390 = vmul.f32 %v20, %v383
  %v391 = vmul.f32 %v21, %v383
  %v392 = vmul.f32 %v22, %v383
  %v393 = vmul.f32 %v23, %v383
  %v394 = vmul.f32 %v24, %v383
  %v395 = vmul.f32 %v25, %v383
  %v396 = vmul.f32 %v26, %v383
  %v397 = vmul.f32 %v27, %v383
  %v398 = vmul.f32 %v28, %v383
  %v399 = vmul.f32 %v29, %v383
  %v400 = vsel %vm51, %v384, 0.0
  %401 = vadd.xlane.f32.xlu0 %v400
  %v402 = vpop.xlane.xlu0 %401
  %v403 = vsel %vm51, %v385, 0.0
  %404 = vadd.xlane.f32.xlu0 %v403
  %v405 = vpop.xlane.xlu0 %404
  %v406 = vsel %vm51, %v386, 0.0
  %407 = vadd.xlane.f32.xlu0 %v406
  %v408 = vpop.xlane.xlu0 %407
  %v409 = vsel %vm51, %v387, 0.0
  %410 = vadd.xlane.f32.xlu0 %v409
  %v411 = vpop.xlane.xlu0 %410
  %v412 = vsel %vm51, %v388, 0.0
  %413 = vadd.xlane.f32.xlu0 %v412
  %v414 = vpop.xlane.xlu0 %413
  %v415 = vsel %vm51, %v389, 0.0
  %416 = vadd.xlane.f32.xlu0 %v415
  %v417 = vpop.xlane.xlu0 %416
  %v418 = vsel %vm51, %v390, 0.0
  %419 = vadd.xlane.f32.xlu0 %v418
  %v420 = vpop.xlane.xlu0 %419
  %v421 = vsel %vm51, %v391, 0.0
  %422 = vadd.xlane.f32.xlu0 %v421
  %v423 = vpop.xlane.xlu0 %422
  %v424 = vsel %vm51, %v392, 0.0
  %425 = vadd.xlane.f32.xlu0 %v424
  %v426 = vpop.xlane.xlu0 %425
  %v427 = vsel %vm51, %v393, 0.0
  %428 = vadd.xlane.f32.xlu0 %v427
  %v429 = vpop.xlane.xlu0 %428
  %v430 = vsel %vm51, %v394, 0.0
  %431 = vadd.xlane.f32.xlu0 %v430
  %v432 = vpop.xlane.xlu0 %431
  %v433 = vsel %vm51, %v395, 0.0
  %434 = vadd.xlane.f32.xlu0 %v433
  %v435 = vpop.xlane.xlu0 %434
  %v436 = vsel %vm51, %v396, 0.0
  %437 = vadd.xlane.f32.xlu0 %v436
  %v438 = vpop.xlane.xlu0 %437
  %v439 = vsel %vm51, %v397, 0.0
  %440 = vadd.xlane.f32.xlu0 %v439
  %v441 = vpop.xlane.xlu0 %440
  %v442 = vsel %vm51, %v398, 0.0
  %443 = vadd.xlane.f32.xlu0 %v442
  %v444 = vpop.xlane.xlu0 %443
  %v445 = vsel %vm51, %v399, 0.0
  %446 = vadd.xlane.f32.xlu0 %v445
  %v447 = vpop.xlane.xlu0 %446
  %vm448 = vcmp.gt.f32.partialorder %v402, 0.0
  %vm449 = vcmp.gt.f32.partialorder %v405, 0.0
  %vm450 = vcmp.gt.f32.partialorder %v408, 0.0
  %vm451 = vcmp.gt.f32.partialorder %v411, 0.0
  %vm452 = vcmp.gt.f32.partialorder %v414, 0.0
  %vm453 = vcmp.gt.f32.partialorder %v417, 0.0
  %vm454 = vcmp.gt.f32.partialorder %v420, 0.0
  %vm455 = vcmp.gt.f32.partialorder %v423, 0.0
  %vm456 = vcmp.gt.f32.partialorder %v426, 0.0
  %vm457 = vcmp.gt.f32.partialorder %v429, 0.0
  %vm458 = vcmp.gt.f32.partialorder %v432, 0.0
  %vm459 = vcmp.gt.f32.partialorder %v435, 0.0
  %vm460 = vcmp.gt.f32.partialorder %v438, 0.0
  %vm461 = vcmp.gt.f32.partialorder %v441, 0.0
  %vm462 = vcmp.gt.f32.partialorder %v444, 0.0
  %vm463 = vcmp.gt.f32.partialorder %v447, 0.0
  %v464 = vmul.f32 %v402, 0.1
  %v465 = vmul.f32 %v405, 0.1
  %v466 = vmul.f32 %v408, 0.1
  %v467 = vmul.f32 %v411, 0.1
  %v468 = vmul.f32 %v414, 0.1
  %v469 = vmul.f32 %v417, 0.1
  %v470 = vmul.f32 %v420, 0.1
  %v471 = vmul.f32 %v423, 0.1
  %v472 = vmul.f32 %v426, 0.1
  %v473 = vmul.f32 %v429, 0.1
  %v474 = vmul.f32 %v432, 0.1
  %v475 = vmul.f32 %v435, 0.1
  %v476 = vmul.f32 %v438, 0.1
  %v477 = vmul.f32 %v441, 0.1
  %v478 = vmul.f32 %v444, 0.1
  %v479 = vmul.f32 %v447, 0.1
  %v480 = vsel %vm448, %v402, %v464
  %v481 = vsel %vm449, %v405, %v465
  %v482 = vsel %vm450, %v408, %v466
  %v483 = vsel %vm451, %v411, %v467
  %v484 = vsel %vm452, %v414, %v468
  %v485 = vsel %vm453, %v417, %v469
  %v486 = vsel %vm454, %v420, %v470
  %v487 = vsel %vm455, %v423, %v471
  %v488 = vsel %vm456, %v426, %v472
  %v489 = vsel %vm457, %v429, %v473
  %v490 = vsel %vm458, %v432, %v474
  %v491 = vsel %vm459, %v435, %v475
  %v492 = vsel %vm460, %v438, %v476
  %v493 = vsel %vm461, %v441, %v477
  %v494 = vsel %vm462, %v444, %v478
  %v495 = vsel %vm463, %v447, %v479
  %v496 = vlaneseq
  %v497 = vshrl.u32 %v496, 7
  %v498 = vsub.s32 4, %v497
  %v499 = vrot.slane %v30, %v498
  %v500 = vmul.f32 %v14, %v499
  %v501 = vmul.f32 %v15, %v499
  %v502 = vmul.f32 %v16, %v499
  %v503 = vmul.f32 %v17, %v499
  %v504 = vmul.f32 %v18, %v499
  %v505 = vmul.f32 %v19, %v499
  %v506 = vmul.f32 %v20, %v499
  %v507 = vmul.f32 %v21, %v499
  %v508 = vmul.f32 %v22, %v499
  %v509 = vmul.f32 %v23, %v499
  %v510 = vmul.f32 %v24, %v499
  %v511 = vmul.f32 %v25, %v499
  %v512 = vmul.f32 %v26, %v499
  %v513 = vmul.f32 %v27, %v499
  %v514 = vmul.f32 %v28, %v499
  %v515 = vmul.f32 %v29, %v499
  %v516 = vsel %vm51, %v500, 0.0
  %517 = vadd.xlane.f32.xlu0 %v516
  %v518 = vpop.xlane.xlu0 %517
  %v519 = vsel %vm51, %v501, 0.0
  %520 = vadd.xlane.f32.xlu0 %v519
  %v521 = vpop.xlane.xlu0 %520
  %v522 = vsel %vm51, %v502, 0.0
  %523 = vadd.xlane.f32.xlu0 %v522
  %v524 = vpop.xlane.xlu0 %523
  %v525 = vsel %vm51, %v503, 0.0
  %526 = vadd.xlane.f32.xlu0 %v525
  %v527 = vpop.xlane.xlu0 %526
  %v528 = vsel %vm51, %v504, 0.0
  %529 = vadd.xlane.f32.xlu0 %v528
  %v530 = vpop.xlane.xlu0 %529
  %v531 = vsel %vm51, %v505, 0.0
  %532 = vadd.xlane.f32.xlu0 %v531
  %v533 = vpop.xlane.xlu0 %532
  %v534 = vsel %vm51, %v506, 0.0
  %535 = vadd.xlane.f32.xlu0 %v534
  %v536 = vpop.xlane.xlu0 %535
  %v537 = vsel %vm51, %v507, 0.0
  %538 = vadd.xlane.f32.xlu0 %v537
  %v539 = vpop.xlane.xlu0 %538
  %v540 = vsel %vm51, %v508, 0.0
  %541 = vadd.xlane.f32.xlu0 %v540
  %v542 = vpop.xlane.xlu0 %541
  %v543 = vsel %vm51, %v509, 0.0
  %544 = vadd.xlane.f32.xlu0 %v543
  %v545 = vpop.xlane.xlu0 %544
  %v546 = vsel %vm51, %v510, 0.0
  %547 = vadd.xlane.f32.xlu0 %v546
  %v548 = vpop.xlane.xlu0 %547
  %v549 = vsel %vm51, %v511, 0.0
  %550 = vadd.xlane.f32.xlu0 %v549
  %v551 = vpop.xlane.xlu0 %550
  %v552 = vsel %vm51, %v512, 0.0
  %553 = vadd.xlane.f32.xlu0 %v552
  %v554 = vpop.xlane.xlu0 %553
  %v555 = vsel %vm51, %v513, 0.0
  %556 = vadd.xlane.f32.xlu0 %v555
  %v557 = vpop.xlane.xlu0 %556
  %v558 = vsel %vm51, %v514, 0.0
  %559 = vadd.xlane.f32.xlu0 %v558
  %v560 = vpop.xlane.xlu0 %559
  %v561 = vsel %vm51, %v515, 0.0
  %562 = vadd.xlane.f32.xlu0 %v561
  %v563 = vpop.xlane.xlu0 %562
  %vm564 = vcmp.gt.f32.partialorder %v518, 0.0
  %vm565 = vcmp.gt.f32.partialorder %v521, 0.0
  %vm566 = vcmp.gt.f32.partialorder %v524, 0.0
  %vm567 = vcmp.gt.f32.partialorder %v527, 0.0
  %vm568 = vcmp.gt.f32.partialorder %v530, 0.0
  %vm569 = vcmp.gt.f32.partialorder %v533, 0.0
  %vm570 = vcmp.gt.f32.partialorder %v536, 0.0
  %vm571 = vcmp.gt.f32.partialorder %v539, 0.0
  %vm572 = vcmp.gt.f32.partialorder %v542, 0.0
  %vm573 = vcmp.gt.f32.partialorder %v545, 0.0
  %vm574 = vcmp.gt.f32.partialorder %v548, 0.0
  %vm575 = vcmp.gt.f32.partialorder %v551, 0.0
  %vm576 = vcmp.gt.f32.partialorder %v554, 0.0
  %vm577 = vcmp.gt.f32.partialorder %v557, 0.0
  %vm578 = vcmp.gt.f32.partialorder %v560, 0.0
  %vm579 = vcmp.gt.f32.partialorder %v563, 0.0
  %v580 = vmul.f32 %v518, 0.1
  %v581 = vmul.f32 %v521, 0.1
  %v582 = vmul.f32 %v524, 0.1
  %v583 = vmul.f32 %v527, 0.1
  %v584 = vmul.f32 %v530, 0.1
  %v585 = vmul.f32 %v533, 0.1
  %v586 = vmul.f32 %v536, 0.1
  %v587 = vmul.f32 %v539, 0.1
  %v588 = vmul.f32 %v542, 0.1
  %v589 = vmul.f32 %v545, 0.1
  %v590 = vmul.f32 %v548, 0.1
  %v591 = vmul.f32 %v551, 0.1
  %v592 = vmul.f32 %v554, 0.1
  %v593 = vmul.f32 %v557, 0.1
  %v594 = vmul.f32 %v560, 0.1
  %v595 = vmul.f32 %v563, 0.1
  %v596 = vsel %vm564, %v518, %v580
  %v597 = vsel %vm565, %v521, %v581
  %v598 = vsel %vm566, %v524, %v582
  %v599 = vsel %vm567, %v527, %v583
  %v600 = vsel %vm568, %v530, %v584
  %v601 = vsel %vm569, %v533, %v585
  %v602 = vsel %vm570, %v536, %v586
  %v603 = vsel %vm571, %v539, %v587
  %v604 = vsel %vm572, %v542, %v588
  %v605 = vsel %vm573, %v545, %v589
  %v606 = vsel %vm574, %v548, %v590
  %v607 = vsel %vm575, %v551, %v591
  %v608 = vsel %vm576, %v554, %v592
  %v609 = vsel %vm577, %v557, %v593
  %v610 = vsel %vm578, %v560, %v594
  %v611 = vsel %vm579, %v563, %v595
  %v612 = vmax.f32 %v132, %v248
  %v613 = vmax.f32 %v133, %v249
  %v614 = vmax.f32 %v134, %v250
  %v615 = vmax.f32 %v135, %v251
  %v616 = vmax.f32 %v136, %v252
  %v617 = vmax.f32 %v137, %v253
  %v618 = vmax.f32 %v138, %v254
  %v619 = vmax.f32 %v139, %v255
  %v620 = vmax.f32 %v140, %v256
  %v621 = vmax.f32 %v141, %v257
  %v622 = vmax.f32 %v142, %v258
  %v623 = vmax.f32 %v143, %v259
  %v624 = vmax.f32 %v144, %v260
  %v625 = vmax.f32 %v145, %v261
  %v626 = vmax.f32 %v146, %v262
  %v627 = vmax.f32 %v147, %v263
  %v628 = vmax.f32 %v612, %v364
  %v629 = vmax.f32 %v613, %v365
  %v630 = vmax.f32 %v614, %v366
  %v631 = vmax.f32 %v615, %v367
  %v632 = vmax.f32 %v616, %v368
  %v633 = vmax.f32 %v617, %v369
  %v634 = vmax.f32 %v618, %v370
  %v635 = vmax.f32 %v619, %v371
  %v636 = vmax.f32 %v620, %v372
  %v637 = vmax.f32 %v621, %v373
  %v638 = vmax.f32 %v622, %v374
  %v639 = vmax.f32 %v623, %v375
  %v640 = vmax.f32 %v624, %v376
  %v641 = vmax.f32 %v625, %v377
  %v642 = vmax.f32 %v626, %v378
  %v643 = vmax.f32 %v627, %v379
  %v644 = vmax.f32 %v628, %v480
  %v645 = vmax.f32 %v629, %v481
  %v646 = vmax.f32 %v630, %v482
  %v647 = vmax.f32 %v631, %v483
  %v648 = vmax.f32 %v632, %v484
  %v649 = vmax.f32 %v633, %v485
  %v650 = vmax.f32 %v634, %v486
  %v651 = vmax.f32 %v635, %v487
  %v652 = vmax.f32 %v636, %v488
  %v653 = vmax.f32 %v637, %v489
  %v654 = vmax.f32 %v638, %v490
  %v655 = vmax.f32 %v639, %v491
  %v656 = vmax.f32 %v640, %v492
  %v657 = vmax.f32 %v641, %v493
  %v658 = vmax.f32 %v642, %v494
  %v659 = vmax.f32 %v643, %v495
  %v660 = vmax.f32 %v644, %v596
  %v661 = vmax.f32 %v645, %v597
  %v662 = vmax.f32 %v646, %v598
  %v663 = vmax.f32 %v647, %v599
  %v664 = vmax.f32 %v648, %v600
  %v665 = vmax.f32 %v649, %v601
  %v666 = vmax.f32 %v650, %v602
  %v667 = vmax.f32 %v651, %v603
  %v668 = vmax.f32 %v652, %v604
  %v669 = vmax.f32 %v653, %v605
  %v670 = vmax.f32 %v654, %v606
  %v671 = vmax.f32 %v655, %v607
  %v672 = vmax.f32 %v656, %v608
  %v673 = vmax.f32 %v657, %v609
  %v674 = vmax.f32 %v658, %v610
  %v675 = vmax.f32 %v659, %v611
  %v676 = vsub.f32 %v132, %v660
  %v677 = vsub.f32 %v133, %v661
  %v678 = vsub.f32 %v134, %v662
  %v679 = vsub.f32 %v135, %v663
  %v680 = vsub.f32 %v136, %v664
  %v681 = vsub.f32 %v137, %v665
  %v682 = vsub.f32 %v138, %v666
  %v683 = vsub.f32 %v139, %v667
  %v684 = vsub.f32 %v140, %v668
  %v685 = vsub.f32 %v141, %v669
  %v686 = vsub.f32 %v142, %v670
  %v687 = vsub.f32 %v143, %v671
  %v688 = vsub.f32 %v144, %v672
  %v689 = vsub.f32 %v145, %v673
  %v690 = vsub.f32 %v146, %v674
  %v691 = vsub.f32 %v147, %v675
  %v692 = vmul.f32 %v676, 1.442695
  %v693 = vpow.pop %v692
  %v694 = vmul.f32 %v677, 1.442695
  %v695 = vpow.pop %v694
  %v696 = vmul.f32 %v678, 1.442695
  %v697 = vpow.pop %v696
  %v698 = vmul.f32 %v679, 1.442695
  %v699 = vpow.pop %v698
  %v700 = vmul.f32 %v680, 1.442695
  %v701 = vpow.pop %v700
  %v702 = vmul.f32 %v681, 1.442695
  %v703 = vpow.pop %v702
  %v704 = vmul.f32 %v682, 1.442695
  %v705 = vpow.pop %v704
  %v706 = vmul.f32 %v683, 1.442695
  %v707 = vpow.pop %v706
  %v708 = vmul.f32 %v684, 1.442695
  %v709 = vpow.pop %v708
  %v710 = vmul.f32 %v685, 1.442695
  %v711 = vpow.pop %v710
  %v712 = vmul.f32 %v686, 1.442695
  %v713 = vpow.pop %v712
  %v714 = vmul.f32 %v687, 1.442695
  %v715 = vpow.pop %v714
  %v716 = vmul.f32 %v688, 1.442695
  %v717 = vpow.pop %v716
  %v718 = vmul.f32 %v689, 1.442695
  %v719 = vpow.pop %v718
  %v720 = vmul.f32 %v690, 1.442695
  %v721 = vpow.pop %v720
  %v722 = vmul.f32 %v691, 1.442695
  %v723 = vpow.pop %v722
  %v724 = vsub.f32 %v248, %v660
  %v725 = vsub.f32 %v249, %v661
  %v726 = vsub.f32 %v250, %v662
  %v727 = vsub.f32 %v251, %v663
  %v728 = vsub.f32 %v252, %v664
  %v729 = vsub.f32 %v253, %v665
  %v730 = vsub.f32 %v254, %v666
  %v731 = vsub.f32 %v255, %v667
  %v732 = vsub.f32 %v256, %v668
  %v733 = vsub.f32 %v257, %v669
  %v734 = vsub.f32 %v258, %v670
  %v735 = vsub.f32 %v259, %v671
  %v736 = vsub.f32 %v260, %v672
  %v737 = vsub.f32 %v261, %v673
  %v738 = vsub.f32 %v262, %v674
  %v739 = vsub.f32 %v263, %v675
  %v740 = vmul.f32 %v724, 1.442695
  %v741 = vpow.pop %v740
  %v742 = vmul.f32 %v725, 1.442695
  %v743 = vpow.pop %v742
  %v744 = vmul.f32 %v726, 1.442695
  %v745 = vpow.pop %v744
  %v746 = vmul.f32 %v727, 1.442695
  %v747 = vpow.pop %v746
  %v748 = vmul.f32 %v728, 1.442695
  %v749 = vpow.pop %v748
  %v750 = vmul.f32 %v729, 1.442695
  %v751 = vpow.pop %v750
  %v752 = vmul.f32 %v730, 1.442695
  %v753 = vpow.pop %v752
  %v754 = vmul.f32 %v731, 1.442695
  %v755 = vpow.pop %v754
  %v756 = vmul.f32 %v732, 1.442695
  %v757 = vpow.pop %v756
  %v758 = vmul.f32 %v733, 1.442695
  %v759 = vpow.pop %v758
  %v760 = vmul.f32 %v734, 1.442695
  %v761 = vpow.pop %v760
  %v762 = vmul.f32 %v735, 1.442695
  %v763 = vpow.pop %v762
  %v764 = vmul.f32 %v736, 1.442695
  %v765 = vpow.pop %v764
  %v766 = vmul.f32 %v737, 1.442695
  %v767 = vpow.pop %v766
  %v768 = vmul.f32 %v738, 1.442695
  %v769 = vpow.pop %v768
  %v770 = vmul.f32 %v739, 1.442695
  %v771 = vpow.pop %v770
  %v772 = vsub.f32 %v364, %v660
  %v773 = vsub.f32 %v365, %v661
  %v774 = vsub.f32 %v366, %v662
  %v775 = vsub.f32 %v367, %v663
  %v776 = vsub.f32 %v368, %v664
  %v777 = vsub.f32 %v369, %v665
  %v778 = vsub.f32 %v370, %v666
  %v779 = vsub.f32 %v371, %v667
  %v780 = vsub.f32 %v372, %v668
  %v781 = vsub.f32 %v373, %v669
  %v782 = vsub.f32 %v374, %v670
  %v783 = vsub.f32 %v375, %v671
  %v784 = vsub.f32 %v376, %v672
  %v785 = vsub.f32 %v377, %v673
  %v786 = vsub.f32 %v378, %v674
  %v787 = vsub.f32 %v379, %v675
  %v788 = vmul.f32 %v772, 1.442695
  %v789 = vpow.pop %v788
  %v790 = vmul.f32 %v773, 1.442695
  %v791 = vpow.pop %v790
  %v792 = vmul.f32 %v774, 1.442695
  %v793 = vpow.pop %v792
  %v794 = vmul.f32 %v775, 1.442695
  %v795 = vpow.pop %v794
  %v796 = vmul.f32 %v776, 1.442695
  %v797 = vpow.pop %v796
  %v798 = vmul.f32 %v777, 1.442695
  %v799 = vpow.pop %v798
  %v800 = vmul.f32 %v778, 1.442695
  %v801 = vpow.pop %v800
  %v802 = vmul.f32 %v779, 1.442695
  %v803 = vpow.pop %v802
  %v804 = vmul.f32 %v780, 1.442695
  %v805 = vpow.pop %v804
  %v806 = vmul.f32 %v781, 1.442695
  %v807 = vpow.pop %v806
  %v808 = vmul.f32 %v782, 1.442695
  %v809 = vpow.pop %v808
  %v810 = vmul.f32 %v783, 1.442695
  %v811 = vpow.pop %v810
  %v812 = vmul.f32 %v784, 1.442695
  %v813 = vpow.pop %v812
  %v814 = vmul.f32 %v785, 1.442695
  %v815 = vpow.pop %v814
  %v816 = vmul.f32 %v786, 1.442695
  %v817 = vpow.pop %v816
  %v818 = vmul.f32 %v787, 1.442695
  %v819 = vpow.pop %v818
  %v820 = vsub.f32 %v480, %v660
  %v821 = vsub.f32 %v481, %v661
  %v822 = vsub.f32 %v482, %v662
  %v823 = vsub.f32 %v483, %v663
  %v824 = vsub.f32 %v484, %v664
  %v825 = vsub.f32 %v485, %v665
  %v826 = vsub.f32 %v486, %v666
  %v827 = vsub.f32 %v487, %v667
  %v828 = vsub.f32 %v488, %v668
  %v829 = vsub.f32 %v489, %v669
  %v830 = vsub.f32 %v490, %v670
  %v831 = vsub.f32 %v491, %v671
  %v832 = vsub.f32 %v492, %v672
  %v833 = vsub.f32 %v493, %v673
  %v834 = vsub.f32 %v494, %v674
  %v835 = vsub.f32 %v495, %v675
  %v836 = vmul.f32 %v820, 1.442695
  %v837 = vpow.pop %v836
  %v838 = vmul.f32 %v821, 1.442695
  %v839 = vpow.pop %v838
  %v840 = vmul.f32 %v822, 1.442695
  %v841 = vpow.pop %v840
  %v842 = vmul.f32 %v823, 1.442695
  %v843 = vpow.pop %v842
  %v844 = vmul.f32 %v824, 1.442695
  %v845 = vpow.pop %v844
  %v846 = vmul.f32 %v825, 1.442695
  %v847 = vpow.pop %v846
  %v848 = vmul.f32 %v826, 1.442695
  %v849 = vpow.pop %v848
  %v850 = vmul.f32 %v827, 1.442695
  %v851 = vpow.pop %v850
  %v852 = vmul.f32 %v828, 1.442695
  %v853 = vpow.pop %v852
  %v854 = vmul.f32 %v829, 1.442695
  %v855 = vpow.pop %v854
  %v856 = vmul.f32 %v830, 1.442695
  %v857 = vpow.pop %v856
  %v858 = vmul.f32 %v831, 1.442695
  %v859 = vpow.pop %v858
  %v860 = vmul.f32 %v832, 1.442695
  %v861 = vpow.pop %v860
  %v862 = vmul.f32 %v833, 1.442695
  %v863 = vpow.pop %v862
  %v864 = vmul.f32 %v834, 1.442695
  %v865 = vpow.pop %v864
  %v866 = vmul.f32 %v835, 1.442695
  %v867 = vpow.pop %v866
  %v868 = vsub.f32 %v596, %v660
  %v869 = vsub.f32 %v597, %v661
  %v870 = vsub.f32 %v598, %v662
  %v871 = vsub.f32 %v599, %v663
  %v872 = vsub.f32 %v600, %v664
  %v873 = vsub.f32 %v601, %v665
  %v874 = vsub.f32 %v602, %v666
  %v875 = vsub.f32 %v603, %v667
  %v876 = vsub.f32 %v604, %v668
  %v877 = vsub.f32 %v605, %v669
  %v878 = vsub.f32 %v606, %v670
  %v879 = vsub.f32 %v607, %v671
  %v880 = vsub.f32 %v608, %v672
  %v881 = vsub.f32 %v609, %v673
  %v882 = vsub.f32 %v610, %v674
  %v883 = vsub.f32 %v611, %v675
  %v884 = vmul.f32 %v868, 1.442695
  %v885 = vpow.pop %v884
  %v886 = vmul.f32 %v869, 1.442695
  %v887 = vpow.pop %v886
  %v888 = vmul.f32 %v870, 1.442695
  %v889 = vpow.pop %v888
  %v890 = vmul.f32 %v871, 1.442695
  %v891 = vpow.pop %v890
  %v892 = vmul.f32 %v872, 1.442695
  %v893 = vpow.pop %v892
  %v894 = vmul.f32 %v873, 1.442695
  %v895 = vpow.pop %v894
  %v896 = vmul.f32 %v874, 1.442695
  %v897 = vpow.pop %v896
  %v898 = vmul.f32 %v875, 1.442695
  %v899 = vpow.pop %v898
  %v900 = vmul.f32 %v876, 1.442695
  %v901 = vpow.pop %v900
  %v902 = vmul.f32 %v877, 1.442695
  %v903 = vpow.pop %v902
  %v904 = vmul.f32 %v878, 1.442695
  %v905 = vpow.pop %v904
  %v906 = vmul.f32 %v879, 1.442695
  %v907 = vpow.pop %v906
  %v908 = vmul.f32 %v880, 1.442695
  %v909 = vpow.pop %v908
  %v910 = vmul.f32 %v881, 1.442695
  %v911 = vpow.pop %v910
  %v912 = vmul.f32 %v882, 1.442695
  %v913 = vpow.pop %v912
  %v914 = vmul.f32 %v883, 1.442695
  %v915 = vpow.pop %v914
  %v916 = vadd.f32 %v693, %v741
  %v917 = vadd.f32 %v695, %v743
  %v918 = vadd.f32 %v697, %v745
  %v919 = vadd.f32 %v699, %v747
  %v920 = vadd.f32 %v701, %v749
  %v921 = vadd.f32 %v703, %v751
  %v922 = vadd.f32 %v705, %v753
  %v923 = vadd.f32 %v707, %v755
  %v924 = vadd.f32 %v709, %v757
  %v925 = vadd.f32 %v711, %v759
  %v926 = vadd.f32 %v713, %v761
  %v927 = vadd.f32 %v715, %v763
  %v928 = vadd.f32 %v717, %v765
  %v929 = vadd.f32 %v719, %v767
  %v930 = vadd.f32 %v721, %v769
  %v931 = vadd.f32 %v723, %v771
  %v932 = vadd.f32 %v916, %v789
  %v933 = vadd.f32 %v917, %v791
  %v934 = vadd.f32 %v918, %v793
  %v935 = vadd.f32 %v919, %v795
  %v936 = vadd.f32 %v920, %v797
  %v937 = vadd.f32 %v921, %v799
  %v938 = vadd.f32 %v922, %v801
  %v939 = vadd.f32 %v923, %v803
  %v940 = vadd.f32 %v924, %v805
  %v941 = vadd.f32 %v925, %v807
  %v942 = vadd.f32 %v926, %v809
  %v943 = vadd.f32 %v927, %v811
  %v944 = vadd.f32 %v928, %v813
  %v945 = vadd.f32 %v929, %v815
  %v946 = vadd.f32 %v930, %v817
  %v947 = vadd.f32 %v931, %v819
  %v948 = vadd.f32 %v932, %v837
  %v949 = vadd.f32 %v933, %v839
  %v950 = vadd.f32 %v934, %v841
  %v951 = vadd.f32 %v935, %v843
  %v952 = vadd.f32 %v936, %v845
  %v953 = vadd.f32 %v937, %v847
  %v954 = vadd.f32 %v938, %v849
  %v955 = vadd.f32 %v939, %v851
  %v956 = vadd.f32 %v940, %v853
  %v957 = vadd.f32 %v941, %v855
  %v958 = vadd.f32 %v942, %v857
  %v959 = vadd.f32 %v943, %v859
  %v960 = vadd.f32 %v944, %v861
  %v961 = vadd.f32 %v945, %v863
  %v962 = vadd.f32 %v946, %v865
  %v963 = vadd.f32 %v947, %v867
  %v964 = vadd.f32 %v948, %v885
  %v965 = vadd.f32 %v949, %v887
  %v966 = vadd.f32 %v950, %v889
  %v967 = vadd.f32 %v951, %v891
  %v968 = vadd.f32 %v952, %v893
  %v969 = vadd.f32 %v953, %v895
  %v970 = vadd.f32 %v954, %v897
  %v971 = vadd.f32 %v955, %v899
  %v972 = vadd.f32 %v956, %v901
  %v973 = vadd.f32 %v957, %v903
  %v974 = vadd.f32 %v958, %v905
  %v975 = vadd.f32 %v959, %v907
  %v976 = vadd.f32 %v960, %v909
  %v977 = vadd.f32 %v961, %v911
  %v978 = vadd.f32 %v962, %v913
  %v979 = vadd.f32 %v963, %v915
  %v980 = vrcp.pop %v964
  %v981 = vmul.f32 1.0, %v980
  %v982 = vrcp.pop %v965
  %v983 = vmul.f32 1.0, %v982
  %v984 = vrcp.pop %v966
  %v985 = vmul.f32 1.0, %v984
  %v986 = vrcp.pop %v967
  %v987 = vmul.f32 1.0, %v986
  %v988 = vrcp.pop %v968
  %v989 = vmul.f32 1.0, %v988
  %v990 = vrcp.pop %v969
  %v991 = vmul.f32 1.0, %v990
  %v992 = vrcp.pop %v970
  %v993 = vmul.f32 1.0, %v992
  %v994 = vrcp.pop %v971
  %v995 = vmul.f32 1.0, %v994
  %v996 = vrcp.pop %v972
  %v997 = vmul.f32 1.0, %v996
  %v998 = vrcp.pop %v973
  %v999 = vmul.f32 1.0, %v998
  %v1000 = vrcp.pop %v974
  %v1001 = vmul.f32 1.0, %v1000
  %v1002 = vrcp.pop %v975
  %v1003 = vmul.f32 1.0, %v1002
  %v1004 = vrcp.pop %v976
  %v1005 = vmul.f32 1.0, %v1004
  %v1006 = vrcp.pop %v977
  %v1007 = vmul.f32 1.0, %v1006
  %v1008 = vrcp.pop %v978
  %v1009 = vmul.f32 1.0, %v1008
  %v1010 = vrcp.pop %v979
  %v1011 = vmul.f32 1.0, %v1010
  %v1012 = vmul.f32 %v693, %v981
  %v1013 = vmul.f32 %v695, %v983
  %v1014 = vmul.f32 %v697, %v985
  %v1015 = vmul.f32 %v699, %v987
  %v1016 = vmul.f32 %v701, %v989
  %v1017 = vmul.f32 %v703, %v991
  %v1018 = vmul.f32 %v705, %v993
  %v1019 = vmul.f32 %v707, %v995
  %v1020 = vmul.f32 %v709, %v997
  %v1021 = vmul.f32 %v711, %v999
  %v1022 = vmul.f32 %v713, %v1001
  %v1023 = vmul.f32 %v715, %v1003
  %v1024 = vmul.f32 %v717, %v1005
  %v1025 = vmul.f32 %v719, %v1007
  %v1026 = vmul.f32 %v721, %v1009
  %v1027 = vmul.f32 %v723, %v1011
  %v1028 = vld [vmem:[%s2] sm:$0xff]
  %v1029 = vld [vmem:[%s2 + $0x18] sm:$0xff]
  %v1030 = vld [vmem:[%s2 + $0x30] sm:$0xff]
  %v1031 = vld [vmem:[%s2 + $0x48] sm:$0xff]
  %v1032 = vld [vmem:[%s2 + $0x60] sm:$0xff]
  %v1033 = vld [vmem:[%s2 + $0x78] sm:$0xff]
  %v1034 = vld [vmem:[%s2 + $0x90] sm:$0xff]
  %v1035 = vld [vmem:[%s2 + $0xa8] sm:$0xff]
  %v1036 = vld [vmem:[%s2 + $0xc0] sm:$0xff]
  %v1037 = vld [vmem:[%s2 + $0xd8] sm:$0xff]
  %v1038 = vld [vmem:[%s2 + $0xf0] sm:$0xff]
  %v1039 = vld [vmem:[%s2 + $0x108] sm:$0xff]
  %v1040 = vld [vmem:[%s2 + $0x120] sm:$0xff]
  %v1041 = vld [vmem:[%s2 + $0x138] sm:$0xff]
  %v1042 = vld [vmem:[%s2 + $0x150] sm:$0xff]
  %v1043 = vld [vmem:[%s2 + $0x168] sm:$0xff]
  %v1044 = vmul.f32 %v1012, %v1028
  %v1045 = vmul.f32 %v1013, %v1029
  %v1046 = vmul.f32 %v1014, %v1030
  %v1047 = vmul.f32 %v1015, %v1031
  %v1048 = vmul.f32 %v1016, %v1032
  %v1049 = vmul.f32 %v1017, %v1033
  %v1050 = vmul.f32 %v1018, %v1034
  %v1051 = vmul.f32 %v1019, %v1035
  %v1052 = vmul.f32 %v1020, %v1036
  %v1053 = vmul.f32 %v1021, %v1037
  %v1054 = vmul.f32 %v1022, %v1038
  %v1055 = vmul.f32 %v1023, %v1039
  %v1056 = vmul.f32 %v1024, %v1040
  %v1057 = vmul.f32 %v1025, %v1041
  %v1058 = vmul.f32 %v1026, %v1042
  %v1059 = vmul.f32 %v1027, %v1043
  %v1060 = vmul.f32 %v741, %v981
  %v1061 = vmul.f32 %v743, %v983
  %v1062 = vmul.f32 %v745, %v985
  %v1063 = vmul.f32 %v747, %v987
  %v1064 = vmul.f32 %v749, %v989
  %v1065 = vmul.f32 %v751, %v991
  %v1066 = vmul.f32 %v753, %v993
  %v1067 = vmul.f32 %v755, %v995
  %v1068 = vmul.f32 %v757, %v997
  %v1069 = vmul.f32 %v759, %v999
  %v1070 = vmul.f32 %v761, %v1001
  %v1071 = vmul.f32 %v763, %v1003
  %v1072 = vmul.f32 %v765, %v1005
  %v1073 = vmul.f32 %v767, %v1007
  %v1074 = vmul.f32 %v769, %v1009
  %v1075 = vmul.f32 %v771, %v1011
  %v1076 = vmul.f32 %v1060, %v1028
  %v1077 = vmul.f32 %v1061, %v1029
  %v1078 = vmul.f32 %v1062, %v1030
  %v1079 = vmul.f32 %v1063, %v1031
  %v1080 = vmul.f32 %v1064, %v1032
  %v1081 = vmul.f32 %v1065, %v1033
  %v1082 = vmul.f32 %v1066, %v1034
  %v1083 = vmul.f32 %v1067, %v1035
  %v1084 = vmul.f32 %v1068, %v1036
  %v1085 = vmul.f32 %v1069, %v1037
  %v1086 = vmul.f32 %v1070, %v1038
  %v1087 = vmul.f32 %v1071, %v1039
  %v1088 = vmul.f32 %v1072, %v1040
  %v1089 = vmul.f32 %v1073, %v1041
  %v1090 = vmul.f32 %v1074, %v1042
  %v1091 = vmul.f32 %v1075, %v1043
  %1108 = vrot.lane.b32.xlu0 %v1076, 64
  %v1109 = vpop.permute.xlu0 %1108
  %1110 = vrot.lane.b32.xlu0 %v1077, 64
  %v1111 = vpop.permute.xlu0 %1110
  %1112 = vrot.lane.b32.xlu0 %v1078, 64
  %v1113 = vpop.permute.xlu0 %1112
  %1114 = vrot.lane.b32.xlu0 %v1079, 64
  %v1115 = vpop.permute.xlu0 %1114
  %1116 = vrot.lane.b32.xlu0 %v1080, 64
  %v1117 = vpop.permute.xlu0 %1116
  %1118 = vrot.lane.b32.xlu0 %v1081, 64
  %v1119 = vpop.permute.xlu0 %1118
  %1120 = vrot.lane.b32.xlu0 %v1082, 64
  %v1121 = vpop.permute.xlu0 %1120
  %1122 = vrot.lane.b32.xlu0 %v1083, 64
  %v1123 = vpop.permute.xlu0 %1122
  %1124 = vrot.lane.b32.xlu0 %v1084, 64
  %v1125 = vpop.permute.xlu0 %1124
  %1126 = vrot.lane.b32.xlu0 %v1085, 64
  %v1127 = vpop.permute.xlu0 %1126
  %1128 = vrot.lane.b32.xlu0 %v1086, 64
  %v1129 = vpop.permute.xlu0 %1128
  %1130 = vrot.lane.b32.xlu0 %v1087, 64
  %v1131 = vpop.permute.xlu0 %1130
  %1132 = vrot.lane.b32.xlu0 %v1088, 64
  %v1133 = vpop.permute.xlu0 %1132
  %1134 = vrot.lane.b32.xlu0 %v1089, 64
  %v1135 = vpop.permute.xlu0 %1134
  %1136 = vrot.lane.b32.xlu0 %v1090, 64
  %v1137 = vpop.permute.xlu0 %1136
  %1138 = vrot.lane.b32.xlu0 %v1091, 64
  %v1139 = vpop.permute.xlu0 %1138
  %v1156 = vadd.f32 %v1044, %v1109
  %v1157 = vadd.f32 %v1045, %v1111
  %v1158 = vadd.f32 %v1046, %v1113
  %v1159 = vadd.f32 %v1047, %v1115
  %v1160 = vadd.f32 %v1048, %v1117
  %v1161 = vadd.f32 %v1049, %v1119
  %v1162 = vadd.f32 %v1050, %v1121
  %v1163 = vadd.f32 %v1051, %v1123
  %v1164 = vadd.f32 %v1052, %v1125
  %v1165 = vadd.f32 %v1053, %v1127
  %v1166 = vadd.f32 %v1054, %v1129
  %v1167 = vadd.f32 %v1055, %v1131
  %v1168 = vadd.f32 %v1056, %v1133
  %v1169 = vadd.f32 %v1057, %v1135
  %v1170 = vadd.f32 %v1058, %v1137
  %v1171 = vadd.f32 %v1059, %v1139
  %v1172 = vmul.f32 %v789, %v981
  %v1173 = vmul.f32 %v791, %v983
  %v1174 = vmul.f32 %v793, %v985
  %v1175 = vmul.f32 %v795, %v987
  %v1176 = vmul.f32 %v797, %v989
  %v1177 = vmul.f32 %v799, %v991
  %v1178 = vmul.f32 %v801, %v993
  %v1179 = vmul.f32 %v803, %v995
  %v1180 = vmul.f32 %v805, %v997
  %v1181 = vmul.f32 %v807, %v999
  %v1182 = vmul.f32 %v809, %v1001
  %v1183 = vmul.f32 %v811, %v1003
  %v1184 = vmul.f32 %v813, %v1005
  %v1185 = vmul.f32 %v815, %v1007
  %v1186 = vmul.f32 %v817, %v1009
  %v1187 = vmul.f32 %v819, %v1011
  %v1188 = vld [vmem:[%s2 + $0x8] sm:$0xff]
  %v1189 = vld [vmem:[%s2 + $0x20] sm:$0xff]
  %v1190 = vld [vmem:[%s2 + $0x38] sm:$0xff]
  %v1191 = vld [vmem:[%s2 + $0x50] sm:$0xff]
  %v1192 = vld [vmem:[%s2 + $0x68] sm:$0xff]
  %v1193 = vld [vmem:[%s2 + $0x80] sm:$0xff]
  %v1194 = vld [vmem:[%s2 + $0x98] sm:$0xff]
  %v1195 = vld [vmem:[%s2 + $0xb0] sm:$0xff]
  %v1196 = vld [vmem:[%s2 + $0xc8] sm:$0xff]
  %v1197 = vld [vmem:[%s2 + $0xe0] sm:$0xff]
  %v1198 = vld [vmem:[%s2 + $0xf8] sm:$0xff]
  %v1199 = vld [vmem:[%s2 + $0x110] sm:$0xff]
  %v1200 = vld [vmem:[%s2 + $0x128] sm:$0xff]
  %v1201 = vld [vmem:[%s2 + $0x140] sm:$0xff]
  %v1202 = vld [vmem:[%s2 + $0x158] sm:$0xff]
  %v1203 = vld [vmem:[%s2 + $0x170] sm:$0xff]
  %v1204 = vmul.f32 %v1172, %v1188
  %v1205 = vmul.f32 %v1173, %v1189
  %v1206 = vmul.f32 %v1174, %v1190
  %v1207 = vmul.f32 %v1175, %v1191
  %v1208 = vmul.f32 %v1176, %v1192
  %v1209 = vmul.f32 %v1177, %v1193
  %v1210 = vmul.f32 %v1178, %v1194
  %v1211 = vmul.f32 %v1179, %v1195
  %v1212 = vmul.f32 %v1180, %v1196
  %v1213 = vmul.f32 %v1181, %v1197
  %v1214 = vmul.f32 %v1182, %v1198
  %v1215 = vmul.f32 %v1183, %v1199
  %v1216 = vmul.f32 %v1184, %v1200
  %v1217 = vmul.f32 %v1185, %v1201
  %v1218 = vmul.f32 %v1186, %v1202
  %v1219 = vmul.f32 %v1187, %v1203
  %v1220 = vadd.f32 %v1156, %v1204
  %v1221 = vadd.f32 %v1157, %v1205
  %v1222 = vadd.f32 %v1158, %v1206
  %v1223 = vadd.f32 %v1159, %v1207
  %v1224 = vadd.f32 %v1160, %v1208
  %v1225 = vadd.f32 %v1161, %v1209
  %v1226 = vadd.f32 %v1162, %v1210
  %v1227 = vadd.f32 %v1163, %v1211
  %v1228 = vadd.f32 %v1164, %v1212
  %v1229 = vadd.f32 %v1165, %v1213
  %v1230 = vadd.f32 %v1166, %v1214
  %v1231 = vadd.f32 %v1167, %v1215
  %v1232 = vadd.f32 %v1168, %v1216
  %v1233 = vadd.f32 %v1169, %v1217
  %v1234 = vadd.f32 %v1170, %v1218
  %v1235 = vadd.f32 %v1171, %v1219
  %v1236 = vmul.f32 %v837, %v981
  %v1237 = vmul.f32 %v839, %v983
  %v1238 = vmul.f32 %v841, %v985
  %v1239 = vmul.f32 %v843, %v987
  %v1240 = vmul.f32 %v845, %v989
  %v1241 = vmul.f32 %v847, %v991
  %v1242 = vmul.f32 %v849, %v993
  %v1243 = vmul.f32 %v851, %v995
  %v1244 = vmul.f32 %v853, %v997
  %v1245 = vmul.f32 %v855, %v999
  %v1246 = vmul.f32 %v857, %v1001
  %v1247 = vmul.f32 %v859, %v1003
  %v1248 = vmul.f32 %v861, %v1005
  %v1249 = vmul.f32 %v863, %v1007
  %v1250 = vmul.f32 %v865, %v1009
  %v1251 = vmul.f32 %v867, %v1011
  %v1252 = vmul.f32 %v1236, %v1188
  %v1253 = vmul.f32 %v1237, %v1189
  %v1254 = vmul.f32 %v1238, %v1190
  %v1255 = vmul.f32 %v1239, %v1191
  %v1256 = vmul.f32 %v1240, %v1192
  %v1257 = vmul.f32 %v1241, %v1193
  %v1258 = vmul.f32 %v1242, %v1194
  %v1259 = vmul.f32 %v1243, %v1195
  %v1260 = vmul.f32 %v1244, %v1196
  %v1261 = vmul.f32 %v1245, %v1197
  %v1262 = vmul.f32 %v1246, %v1198
  %v1263 = vmul.f32 %v1247, %v1199
  %v1264 = vmul.f32 %v1248, %v1200
  %v1265 = vmul.f32 %v1249, %v1201
  %v1266 = vmul.f32 %v1250, %v1202
  %v1267 = vmul.f32 %v1251, %v1203
  %1284 = vrot.lane.b32.xlu0 %v1252, 64
  %v1285 = vpop.permute.xlu0 %1284
  %1286 = vrot.lane.b32.xlu0 %v1253, 64
  %v1287 = vpop.permute.xlu0 %1286
  %1288 = vrot.lane.b32.xlu0 %v1254, 64
  %v1289 = vpop.permute.xlu0 %1288
  %1290 = vrot.lane.b32.xlu0 %v1255, 64
  %v1291 = vpop.permute.xlu0 %1290
  %1292 = vrot.lane.b32.xlu0 %v1256, 64
  %v1293 = vpop.permute.xlu0 %1292
  %1294 = vrot.lane.b32.xlu0 %v1257, 64
  %v1295 = vpop.permute.xlu0 %1294
  %1296 = vrot.lane.b32.xlu0 %v1258, 64
  %v1297 = vpop.permute.xlu0 %1296
  %1298 = vrot.lane.b32.xlu0 %v1259, 64
  %v1299 = vpop.permute.xlu0 %1298
  %1300 = vrot.lane.b32.xlu0 %v1260, 64
  %v1301 = vpop.permute.xlu0 %1300
  %1302 = vrot.lane.b32.xlu0 %v1261, 64
  %v1303 = vpop.permute.xlu0 %1302
  %1304 = vrot.lane.b32.xlu0 %v1262, 64
  %v1305 = vpop.permute.xlu0 %1304
  %1306 = vrot.lane.b32.xlu0 %v1263, 64
  %v1307 = vpop.permute.xlu0 %1306
  %1308 = vrot.lane.b32.xlu0 %v1264, 64
  %v1309 = vpop.permute.xlu0 %1308
  %1310 = vrot.lane.b32.xlu0 %v1265, 64
  %v1311 = vpop.permute.xlu0 %1310
  %1312 = vrot.lane.b32.xlu0 %v1266, 64
  %v1313 = vpop.permute.xlu0 %1312
  %1314 = vrot.lane.b32.xlu0 %v1267, 64
  %v1315 = vpop.permute.xlu0 %1314
  %v1332 = vadd.f32 %v1220, %v1285
  %v1333 = vadd.f32 %v1221, %v1287
  %v1334 = vadd.f32 %v1222, %v1289
  %v1335 = vadd.f32 %v1223, %v1291
  %v1336 = vadd.f32 %v1224, %v1293
  %v1337 = vadd.f32 %v1225, %v1295
  %v1338 = vadd.f32 %v1226, %v1297
  %v1339 = vadd.f32 %v1227, %v1299
  %v1340 = vadd.f32 %v1228, %v1301
  %v1341 = vadd.f32 %v1229, %v1303
  %v1342 = vadd.f32 %v1230, %v1305
  %v1343 = vadd.f32 %v1231, %v1307
  %v1344 = vadd.f32 %v1232, %v1309
  %v1345 = vadd.f32 %v1233, %v1311
  %v1346 = vadd.f32 %v1234, %v1313
  %v1347 = vadd.f32 %v1235, %v1315
  %v1348 = vmul.f32 %v885, %v981
  %v1349 = vmul.f32 %v887, %v983
  %v1350 = vmul.f32 %v889, %v985
  %v1351 = vmul.f32 %v891, %v987
  %v1352 = vmul.f32 %v893, %v989
  %v1353 = vmul.f32 %v895, %v991
  %v1354 = vmul.f32 %v897, %v993
  %v1355 = vmul.f32 %v899, %v995
  %v1356 = vmul.f32 %v901, %v997
  %v1357 = vmul.f32 %v903, %v999
  %v1358 = vmul.f32 %v905, %v1001
  %v1359 = vmul.f32 %v907, %v1003
  %v1360 = vmul.f32 %v909, %v1005
  %v1361 = vmul.f32 %v911, %v1007
  %v1362 = vmul.f32 %v913, %v1009
  %v1363 = vmul.f32 %v915, %v1011
  %v1364 = vld [vmem:[%s2 + $0x10] sm:$0xff]
  %v1365 = vld [vmem:[%s2 + $0x28] sm:$0xff]
  %v1366 = vld [vmem:[%s2 + $0x40] sm:$0xff]
  %v1367 = vld [vmem:[%s2 + $0x58] sm:$0xff]
  %v1368 = vld [vmem:[%s2 + $0x70] sm:$0xff]
  %v1369 = vld [vmem:[%s2 + $0x88] sm:$0xff]
  %v1370 = vld [vmem:[%s2 + $0xa0] sm:$0xff]
  %v1371 = vld [vmem:[%s2 + $0xb8] sm:$0xff]
  %v1372 = vld [vmem:[%s2 + $0xd0] sm:$0xff]
  %v1373 = vld [vmem:[%s2 + $0xe8] sm:$0xff]
  %v1374 = vld [vmem:[%s2 + $0x100] sm:$0xff]
  %v1375 = vld [vmem:[%s2 + $0x118] sm:$0xff]
  %v1376 = vld [vmem:[%s2 + $0x130] sm:$0xff]
  %v1377 = vld [vmem:[%s2 + $0x148] sm:$0xff]
  %v1378 = vld [vmem:[%s2 + $0x160] sm:$0xff]
  %v1379 = vld [vmem:[%s2 + $0x178] sm:$0xff]
  %v1380 = vmul.f32 %v1348, %v1364
  %v1381 = vmul.f32 %v1349, %v1365
  %v1382 = vmul.f32 %v1350, %v1366
  %v1383 = vmul.f32 %v1351, %v1367
  %v1384 = vmul.f32 %v1352, %v1368
  %v1385 = vmul.f32 %v1353, %v1369
  %v1386 = vmul.f32 %v1354, %v1370
  %v1387 = vmul.f32 %v1355, %v1371
  %v1388 = vmul.f32 %v1356, %v1372
  %v1389 = vmul.f32 %v1357, %v1373
  %v1390 = vmul.f32 %v1358, %v1374
  %v1391 = vmul.f32 %v1359, %v1375
  %v1392 = vmul.f32 %v1360, %v1376
  %v1393 = vmul.f32 %v1361, %v1377
  %v1394 = vmul.f32 %v1362, %v1378
  %v1395 = vmul.f32 %v1363, %v1379
  %v1396 = vadd.f32 %v1332, %v1380
  %v1397 = vadd.f32 %v1333, %v1381
  %v1398 = vadd.f32 %v1334, %v1382
  %v1399 = vadd.f32 %v1335, %v1383
  %v1400 = vadd.f32 %v1336, %v1384
  %v1401 = vadd.f32 %v1337, %v1385
  %v1402 = vadd.f32 %v1338, %v1386
  %v1403 = vadd.f32 %v1339, %v1387
  %v1404 = vadd.f32 %v1340, %v1388
  %v1405 = vadd.f32 %v1341, %v1389
  %v1406 = vadd.f32 %v1342, %v1390
  %v1407 = vadd.f32 %v1343, %v1391
  %v1408 = vadd.f32 %v1344, %v1392
  %v1409 = vadd.f32 %v1345, %v1393
  %v1410 = vadd.f32 %v1346, %v1394
  %v1411 = vadd.f32 %v1347, %v1395
  %1412 = vst.msk [vmem:[%s3] sm:$0xff] %vm51, %v1396
  %1413 = vst.msk [vmem:[%s3 + $0x8] sm:$0xff] %vm51, %v1397
  %1414 = vst.msk [vmem:[%s3 + $0x10] sm:$0xff] %vm51, %v1398
  %1415 = vst.msk [vmem:[%s3 + $0x18] sm:$0xff] %vm51, %v1399
  %1416 = vst.msk [vmem:[%s3 + $0x20] sm:$0xff] %vm51, %v1400
  %1417 = vst.msk [vmem:[%s3 + $0x28] sm:$0xff] %vm51, %v1401
  %1418 = vst.msk [vmem:[%s3 + $0x30] sm:$0xff] %vm51, %v1402
  %1419 = vst.msk [vmem:[%s3 + $0x38] sm:$0xff] %vm51, %v1403
  %1420 = vst.msk [vmem:[%s3 + $0x40] sm:$0xff] %vm51, %v1404
  %1421 = vst.msk [vmem:[%s3 + $0x48] sm:$0xff] %vm51, %v1405
  %1422 = vst.msk [vmem:[%s3 + $0x50] sm:$0xff] %vm51, %v1406
  %1423 = vst.msk [vmem:[%s3 + $0x58] sm:$0xff] %vm51, %v1407
  %1424 = vst.msk [vmem:[%s3 + $0x60] sm:$0xff] %vm51, %v1408
  %1425 = vst.msk [vmem:[%s3 + $0x68] sm:$0xff] %vm51, %v1409
  %1426 = vst.msk [vmem:[%s3 + $0x70] sm:$0xff] %vm51, %v1410
  %1427 = vst.msk [vmem:[%s3 + $0x78] sm:$0xff] %vm51, %v1411
  // Predicated region
  $region14: #{tpu_custom_call.1} parent=0 // pred_check
    _
  $region15: #{tpu_custom_call.1} parent=0 // pred_check_branch
    %1429 = sbr.rel (0) target = $region17
  $region16: #{tpu_custom_call.1} parent=0 // pred_region
    _
  $region17: #{tpu_custom_call.1} parent=0 // pred_fallthru
    _
  // Predicated region
  $region18: #{tpu_custom_call.1} parent=0 // pred_check
    _
  $region19: #{tpu_custom_call.1} parent=0 // pred_check_branch
    %1431 = sbr.rel (0) target = $region21
  $region20: #{tpu_custom_call.1} parent=0 // pred_region
    _
  $region21: #{tpu_custom_call.1} parent=0 // pred_fallthru
    _

</llo_original>
